<compile_context>
chip_gen: v7x
topology: tpu7x:2x2x1
jax: 0.10.0
libtpu: 0.0.40
codegen_flags: <defaults>
</compile_context>

<pallas_src>
import functools

import jax
import jax.numpy as jnp
from jax.experimental import pallas as pl
from jax.experimental.pallas import tpu as pltpu


def _meca_kernel(x_ref, a_ref, b_ref, wbt_ref, o_ref, *, inv_hw):
    # x_ref: (Bn, C, HW)   a_ref/b_ref: (1, C)   wbt_ref: (C, C)   o_ref: (Bn, C, HW)
    # Global average + max pool over the spatial (lane) axis, f32 accumulation.
    # Read x_ref at each use (no value binding of the slab -> no extra VMEM copy).
    avg = jnp.sum(x_ref[...], axis=-1, dtype=jnp.float32) * inv_hw   # (Bn, C)
    mx = jnp.max(x_ref[...], axis=-1).astype(jnp.float32)            # (Bn, C)
    y = avg + mx

    # conv0 (1-tap Conv1d) folded with eval-mode BatchNorm into a per-channel affine.
    y = y * a_ref[...] + b_ref[...]                                  # (Bn, C)
    y = jnp.maximum(y, 0.0)                                          # ReLU

    # k-tap Conv1d across the channel axis as a banded (Bn,C)@(C,C) matmul.
    y = jnp.dot(y, wbt_ref[...], preferred_element_type=jnp.float32)  # (Bn, C)

    gate = jax.nn.sigmoid(y)                                         # (Bn, C) f32

    # Multiply in f32 (type promotion) and cast the product once on store;
    # the (Bn, C, 1) gate broadcasts over the HW lanes.
    o_ref[...] = (x_ref[...] * gate[:, :, None]).astype(o_ref.dtype)


def _cdiv(a, b):
    return -(-a // b)


def _tpu_budget():
    """Return (target_tile_bytes, num_tensorcores, vmem_capacity_bytes)."""
    vmem_cap = 64 << 20                       # conservative fallback (v7x-sized)
    try:
        info = pltpu.get_tpu_info()
        vmem_cap = int(getattr(info, "vmem_capacity_bytes", vmem_cap))
    except Exception:
        pass
    if vmem_cap >= (100 << 20):               # v5e / v6e: 128 MiB VMEM, 1 TC/chip
        return 16 << 20, 1, vmem_cap
    return 8 << 20, 2, vmem_cap               # v7x-class: 64 MiB VMEM/TC, 2 TCs


def _choose_block_n(n, per_batch_bytes, target_tile_bytes, num_cores):
    """Largest Bn (batch rows per slab) within the tile budget.

    On multi-TC parts, nudge Bn so the grid length is a multiple of the TC
    count (balanced megacore sharding).  Partial last blocks are allowed, so
    Bn does not need to divide n.
    """
    max_bn = max(1, int(target_tile_bytes // max(1, per_batch_bytes)))
    bn = min(n, max_bn)
    if num_cores > 1 and n > 1:
        grid = _cdiv(n, bn)
        if grid % num_cores != 0:
            target_grid = _cdiv(grid, num_cores) * num_cores
            cand = max(1, _cdiv(n, target_grid))
            if _cdiv(n, cand) % num_cores == 0:
                bn = cand
    return bn


def meca_forward(x, w0, b0, gamma, beta, running_mean, running_var, eps, conv_w,
                 *, block_n=None, target_tile_bytes=None):
    """MECA forward.

    x: (N, C, H, W); w0, b0: scalars (Conv1d(1,1,1)); gamma/beta/running_*: (C,);
    conv_w: (k,) weights of Conv1d(1,1,k, padding=k//2, bias=False).
    """
    N, C, H, W = x.shape
    HW = H * W
    k = conv_w.shape[0]
    pad = k // 2

    # --- host-side parameter folding (free) ---------------------------------
    bn_scale = gamma / jnp.sqrt(running_var + eps)                    # (C,)
    bn_shift = beta - running_mean * bn_scale                         # (C,)
    a = (bn_scale * w0).reshape(1, C).astype(jnp.float32)             # conv0 w folded
    b = (bn_scale * b0 + bn_shift).reshape(1, C).astype(jnp.float32)  # conv0 b folded

    # Banded matrix for the channel-wise Conv1d:
    #   out[c_out] = sum_j conv_w[j] * y_pad[c_out + j],  y_pad zero-padded by `pad`.
    ci = jnp.arange(C)[None, :]          # c_in
    co = jnp.arange(C)[:, None]          # c_out
    tap = ci - co + pad
    band = jnp.where((tap >= 0) & (tap < k),
                     conv_w[jnp.clip(tap, 0, k - 1)], 0.0)            # (C_out, C_in)
    wbt = band.T.astype(jnp.float32)                                  # (C_in, C_out)

    # --- generation-aware tiling ---------------------------------------------
    tile_budget, num_cores, vmem_cap = _tpu_budget()
    if target_tile_bytes is not None:
        tile_budget = target_tile_bytes
    per_batch_bytes = C * HW * x.dtype.itemsize
    bn_blk = block_n if block_n is not None else _choose_block_n(
        N, per_batch_bytes, tile_budget, num_cores)
    grid = (_cdiv(N, bn_blk),)           # partial last block allowed (masked store)

    tile_bytes = bn_blk * per_batch_bytes
    # Footprint: double-buffered input + output tiles, params, slack; clamp to HW.
    vmem_limit = min(int(vmem_cap * 3 // 4),
                     max(32 << 20, 4 * tile_bytes + (4 << 20)))

    x_flat = x.reshape(N, C, HW)
    kernel = functools.partial(_meca_kernel, inv_hw=1.0 / HW)

    cost = pl.CostEstimate(
        flops=int(N * C * (2 * HW + 2 * C)),
        transcendentals=int(N * C),
        bytes_accessed=int(2 * N * C * HW * x.dtype.itemsize + (C * C + 2 * C) * 4),
    )

    out = pl.pallas_call(
        kernel,
        out_shape=jax.ShapeDtypeStruct((N, C, HW), x.dtype),
        grid_spec=pltpu.PrefetchScalarGridSpec(
            num_scalar_prefetch=0,
            grid=grid,
            in_specs=[
                pl.BlockSpec((bn_blk, C, HW), lambda n: (n, 0, 0)),   # x slab
                pl.BlockSpec((1, C), lambda n: (0, 0)),               # folded scale
                pl.BlockSpec((1, C), lambda n: (0, 0)),               # folded shift
                pl.BlockSpec((C, C), lambda n: (0, 0)),               # banded conv
            ],
            out_specs=pl.BlockSpec((bn_blk, C, HW), lambda n: (n, 0, 0)),
        ),
        compiler_params=pltpu.CompilerParams(
            dimension_semantics=("parallel",),
            vmem_limit_bytes=int(vmem_limit),
        ),
        cost_estimate=cost,
    )(x_flat, a, b, wbt)

    return out.reshape(N, C, H, W)


def reference_meca(x, w0, b0, gamma, beta, running_mean, running_var, eps, conv_w):
    """Pure-JAX mirror of the PyTorch MECA.forward (eval-mode BatchNorm)."""
    N, C, H, W = x.shape
    k = conv_w.shape[0]
    pad = k // 2

    avg = jnp.mean(x, axis=(2, 3))                    # AdaptiveAvgPool2d(1)
    mx = jnp.max(x, axis=(2, 3))                      # AdaptiveMaxPool2d(1)
    y = avg + mx                                      # (N, C)
    y = w0 * y + b0                                   # Conv1d(1,1,1)
    y = gamma * (y - running_mean) / jnp.sqrt(running_var + eps) + beta  # BN (eval)
    y = jnp.maximum(y, 0.0)                           # ReLU
    y_pad = jnp.pad(y, ((0, 0), (pad, pad)))          # Conv1d(1,1,k) across C
    y = sum(conv_w[j] * y_pad[:, j:j + C] for j in range(k))
    s = jax.nn.sigmoid(y)                             # (N, C)
    return x * s[:, :, None, None]


if __name__ == "__main__":
    # BatchNorm2d(num_features=32) in the module fixes C = 32.
    N, C, H, W = 2, 32, 16, 16
    k = 5
    eps = 1e-5

    key = jax.random.PRNGKey(0)
    kx, k0, k1, k2, k3, k4, k5, k6 = jax.random.split(key, 8)

    x = jax.random.normal(kx, (N, C, H, W), dtype=jnp.float32)
    w0 = jax.random.normal(k0, (), dtype=jnp.float32) * 0.5        # conv0 weight
    b0 = jax.random.normal(k1, (), dtype=jnp.float32) * 0.1        # conv0 bias
    gamma = 1.0 + 0.1 * jax.random.normal(k2, (C,), dtype=jnp.float32)
    beta = 0.1 * jax.random.normal(k3, (C,), dtype=jnp.float32)
    running_mean = 0.1 * jax.random.normal(k4, (C,), dtype=jnp.float32)
    running_var = 0.5 + jax.random.uniform(k5, (C,), dtype=jnp.float32)
    conv_w = jax.random.normal(k6, (k,), dtype=jnp.float32) * 0.3  # Conv1d(1,1,5) w

    out = meca_forward(x, w0, b0, gamma, beta, running_mean, running_var, eps, conv_w)
    out = jax.block_until_ready(out)

    ref = reference_meca(x, w0, b0, gamma, beta, running_mean, running_var, eps, conv_w)
    assert out.shape == (N, C, H, W)
    assert jnp.allclose(out, ref, atol=1e-5, rtol=1e-5), "mismatch vs reference"

    # Exercise the partial final batch block path (N not a multiple of block_n).
    x3 = jax.random.normal(jax.random.PRNGKey(1), (3, C, H, W), dtype=jnp.float32)
    out3 = meca_forward(x3, w0, b0, gamma, beta, running_mean, running_var, eps,
                        conv_w, block_n=2)
    out3 = jax.block_until_ready(out3)
    ref3 = reference_meca(x3, w0, b0, gamma, beta, running_mean, running_var, eps,
                          conv_w)
    assert jnp.allclose(out3, ref3, atol=1e-5, rtol=1e-5), "partial-block mismatch"

    print("KERNEL_OK")
</pallas_src>

<mosaic_0001>
module attributes {stable_mosaic.version = 11 : i64} {
  func.func @_meca_kernel(%arg0: i32, %arg1: memref<1x32x256xf32, #tpu.memory_space<vmem>>, %arg2: memref<1x32xf32, #tpu.memory_space<vmem>>, %arg3: memref<1x32xf32, #tpu.memory_space<vmem>>, %arg4: memref<32x32xf32, #tpu.memory_space<vmem>>, %arg5: memref<1x32x256xf32, #tpu.memory_space<vmem>>) attributes {dimension_semantics = [#tpu.dimension_semantics<parallel>], iteration_bounds = array<i64: 2>, scalar_prefetch = 0 : i64, scratch_operands = 0 : i64, tpu.core_type = #tpu.core_type<tc>, window_params = [{transform_indices = @transform_0, window_bounds = array<i64: 1, 32, 256>}, {pipeline_mode = #tpu.pipeline_mode<synchronous>, transform_indices = @transform_1, window_bounds = array<i64: 1, 32>}, {pipeline_mode = #tpu.pipeline_mode<synchronous>, transform_indices = @transform_2, window_bounds = array<i64: 1, 32>}, {pipeline_mode = #tpu.pipeline_mode<synchronous>, transform_indices = @transform_3, window_bounds = array<i64: 32, 32>}, {transform_indices = @transform_4, window_bounds = array<i64: 1, 32, 256>}]} {
    %c0 = arith.constant 0 : index
    %c0_0 = arith.constant 0 : index
    %c0_1 = arith.constant 0 : index
    %0 = vector.load %arg1[%c0, %c0_0, %c0_1] : memref<1x32x256xf32, #tpu.memory_space<vmem>>, vector<1x32x256xf32>
    %cst = arith.constant dense<0.000000e+00> : vector<1x32xf32>
    %1 = vector.multi_reduction <add>, %0, %cst [2] : vector<1x32x256xf32> to vector<1x32xf32>
    %cst_2 = arith.constant 3.906250e-03 : f32
    %2 = vector.broadcast %cst_2 : f32 to vector<1x32xf32>
    %3 = arith.mulf %1, %2 : vector<1x32xf32>
    %c0_3 = arith.constant 0 : index
    %c0_4 = arith.constant 0 : index
    %c0_5 = arith.constant 0 : index
    %4 = vector.load %arg1[%c0_3, %c0_4, %c0_5] : memref<1x32x256xf32, #tpu.memory_space<vmem>>, vector<1x32x256xf32>
    %cst_6 = arith.constant dense<0xFF800000> : vector<1x32xf32>
    %5 = vector.multi_reduction <maximumf>, %4, %cst_6 [2] : vector<1x32x256xf32> to vector<1x32xf32>
    %6 = arith.addf %3, %5 : vector<1x32xf32>
    %c0_7 = arith.constant 0 : index
    %c0_8 = arith.constant 0 : index
    %7 = vector.load %arg2[%c0_7, %c0_8] : memref<1x32xf32, #tpu.memory_space<vmem>>, vector<1x32xf32>
    %8 = arith.mulf %6, %7 : vector<1x32xf32>
    %c0_9 = arith.constant 0 : index
    %c0_10 = arith.constant 0 : index
    %9 = vector.load %arg3[%c0_9, %c0_10] : memref<1x32xf32, #tpu.memory_space<vmem>>, vector<1x32xf32>
    %10 = arith.addf %8, %9 : vector<1x32xf32>
    %cst_11 = arith.constant 0.000000e+00 : f32
    %11 = vector.broadcast %cst_11 : f32 to vector<1x32xf32>
    %12 = arith.maximumf %10, %11 : vector<1x32xf32>
    %c0_12 = arith.constant 0 : index
    %c0_13 = arith.constant 0 : index
    %13 = vector.load %arg4[%c0_12, %c0_13] : memref<32x32xf32, #tpu.memory_space<vmem>>, vector<32x32xf32>
    %cst_14 = arith.constant dense<0.000000e+00> : vector<1x32xf32>
    %14 = tpu.matmul %12, %13, %cst_14 {dimension_numbers = #tpu.dot_dimension_numbers<[1], [0], [0], [1], [0, 0, 1, 1], [], []>} : vector<1x32xf32>, vector<32x32xf32>, vector<1x32xf32> -> vector<1x32xf32>
    %15 = arith.negf %14 : vector<1x32xf32>
    %16 = math.exp %15 : vector<1x32xf32>
    %cst_15 = arith.constant 1.000000e+00 : f32
    %17 = vector.broadcast %cst_15 : f32 to vector<1x32xf32>
    %18 = arith.addf %17, %16 : vector<1x32xf32>
    %19 = arith.divf %17, %18 : vector<1x32xf32>
    %c0_16 = arith.constant 0 : index
    %c0_17 = arith.constant 0 : index
    %c0_18 = arith.constant 0 : index
    %20 = vector.load %arg1[%c0_16, %c0_17, %c0_18] : memref<1x32x256xf32, #tpu.memory_space<vmem>>, vector<1x32x256xf32>
    %21 = vector.shape_cast %19 : vector<1x32xf32> to vector<1x32x1xf32>
    %22 = vector.broadcast %21 : vector<1x32x1xf32> to vector<1x32x256xf32>
    %23 = arith.mulf %20, %22 : vector<1x32x256xf32>
    %c0_19 = arith.constant 0 : index
    %c0_20 = arith.constant 0 : index
    %c0_21 = arith.constant 0 : index
    %24 = vector.load %arg5[%c0_19, %c0_20, %c0_21] : memref<1x32x256xf32, #tpu.memory_space<vmem>>, vector<1x32x256xf32>
    tpu.vector_store %arg5[%c0_19, %c0_20, %c0_21], %23 {strides = array<i32>} : memref<1x32x256xf32, #tpu.memory_space<vmem>>, vector<1x32x256xf32>,
    return
  }
  func.func @transform_0(%arg0: i32) -> (i32, i32, i32) {
    %c0_i32 = arith.constant 0 : i32
    %c0_i32_0 = arith.constant 0 : i32
    %c0_i32_1 = arith.constant 0 : i32
    return %arg0, %c0_i32, %c0_i32_0 : i32, i32, i32
  }
  func.func @transform_1(%arg0: i32) -> (i32, i32) {
    %c0_i32 = arith.constant 0 : i32
    %c0_i32_0 = arith.constant 0 : i32
    %c0_i32_1 = arith.constant 0 : i32
    return %c0_i32, %c0_i32_0 : i32, i32
  }
  func.func @transform_2(%arg0: i32) -> (i32, i32) {
    %c0_i32 = arith.constant 0 : i32
    %c0_i32_0 = arith.constant 0 : i32
    %c0_i32_1 = arith.constant 0 : i32
    return %c0_i32, %c0_i32_0 : i32, i32
  }
  func.func @transform_3(%arg0: i32) -> (i32, i32) {
    %c0_i32 = arith.constant 0 : i32
    %c0_i32_0 = arith.constant 0 : i32
    %c0_i32_1 = arith.constant 0 : i32
    return %c0_i32, %c0_i32_0 : i32, i32
  }
  func.func @transform_4(%arg0: i32) -> (i32, i32, i32) {
    %c0_i32 = arith.constant 0 : i32
    %c0_i32_0 = arith.constant 0 : i32
    %c0_i32_1 = arith.constant 0 : i32
    return %arg0, %c0_i32, %c0_i32_0 : i32, i32, i32
  }
}

</mosaic_0001>

<llo_original>
// kernel: tpu_custom_call.1
$region0: #{tpu_custom_call.1}
  #allocation0 [shape = 'u32[]', space=smem, size = 0x4, offset = 0x4, fixed_abs, tag = 'smem constant byte address 0x4 - core index']
  #allocation1 [shape = 'u32[144,128]{1,0:T(1,128)}', space=vmem, size = 0x12000, scoped, tag = 'internal scratch']
  %s0 = inlined_call_operand.hbm [shape: f32[2,32,256], index: 0, kind: input, shape index: {}]
  %s1 = inlined_call_operand.vmem [shape: f32[1,32], index: 1, kind: input, shape index: {}]
  %s2 = inlined_call_operand.vmem [shape: f32[1,32], index: 2, kind: input, shape index: {}]
  %s3 = inlined_call_operand.hbm [shape: f32[32,32], index: 3, kind: input, shape index: {}]
  %s4 = inlined_call_operand.hbm [shape: f32[2,32,256], index: 4, kind: output, shape index: {}]
  %s5 = sld [smem:[#allocation0]]
  $region57: #{tpu_custom_call.1} parent=0
    _
  %s7 = ssub.s32 1, %s5
  %s8 = scalar_select 0, %s7, %s5
  $region1: #{tpu_custom_call.1} parent=0
    #allocation2 [shape = 'u8[65536]{0}', space=vmem, size = 0x10000, scoped, tag = 'input window, operand 0']
    #allocation3 [shape = 's32[2]{0}', space=sflag, size = 0x8, scoped, tag = 'scoped memory for tpu_custom_call.1']
    #allocation4 [shape = 's32[2]{0}', space=sflag, size = 0x8, scoped, tag = 'scoped memory for tpu_custom_call.1']
    #allocation5 [shape = 'u8[16384]{0}', space=vmem, size = 0x4000, scoped, tag = 'input window, operand 3, single buffered']
    #allocation6 [shape = 's32[1]{0}', space=sflag, size = 0x4, scoped, tag = 'scoped memory for tpu_custom_call.1']
    #allocation7 [shape = 'u8[65536]{0}', space=vmem, size = 0x10000, scoped, tag = 'output window, operand 0']
    %9 = vsyncpa [#allocation3], 0
    %s10 = scalar_lea.sflag [#allocation3], 1
    %11 = vsyncpa %s10, 0
    %12 = vsyncpa [#allocation6], 0
    %13 = vsyncpa [#allocation4], 0
    %s14 = scalar_lea.sflag [#allocation4], 1
    %15 = vsyncpa %s14, 0
    loop: start=0, step=1, limit=4
    $region2: #{tpu_custom_call.1} parent=1 // loop_pre_header
      _
    $region3: #{tpu_custom_call.1} parent=1 // loop_header
      %s17 = sphi 0, %s21
      %p18 = scmp.ge.s32.totalorder %s17, 4
      %s27 = sphi 0, %s29
      %s30 = sphi 0, %s27
      %s31 = sphi 0, %s30
      %s47 = sphi 0, %s31
      %s51 = sphi 0, %s51
      %s53 = sphi 0, %s51
      %s54 = sphi 0, %s53
      %s68 = sphi 0, %s54
      %s72 = sphi 0, %s72
      %s74 = sphi 0, %s72
      %s75 = sphi 0, %s74
      %s89 = sphi 0, %s75
      %s93 = sphi 0, %s93
      %s95 = sphi 0, %s93
      %s96 = sphi 0, %s95
      %s110 = sphi 0, %s96
      %s116 = sphi 0, %s118
      %s119 = sphi 0, %s116
      %s120 = sphi 0, %s119
      %s136 = sphi 0, %s120
    $region4: #{tpu_custom_call.1} parent=1 // loop_header_branch
      %20 = sbr.rel (%p18) target = $region8
    $region5: #{tpu_custom_call.1} parent=1 // loop_body
      %s22 = ssub.s32 %s17, 1
      %s23 = ssub.s32 %s17, 2
      %s24 = sadd.s32 %s17, 1
      %s25 = ssub.s32 %s17, %s24
      %p26 = scmp.eq.s32.totalorder %s25, 0
      %s28 = sadd.s32 %s27, 1
      %s29 = scalar_select %p26, %s27, %s28
      %p32 = pneg %p26
      %p33 = scmp.eq.s32.totalorder %s17, 1
      %p34 = por %p32, %p33
      %p35 = scmp.ne.s32.totalorder %s27, %s30
      %p36 = scmp.eq.s32.totalorder %s17, 0
      %p37 = por %p35, %p36
      %p38 = scmp.ne.s32.totalorder %s27, %s30
      %p39 = scmp.eq.s32.totalorder %s22, 1
      %p40 = por %p38, %p39
      %p41 = scmp.ne.s32.totalorder %s30, %s31
      %p42 = scmp.eq.s32.totalorder %s22, 0
      %p43 = por %p41, %p42
      %p44 = scmp.ne.s32.totalorder %s30, %s31
      %p45 = scmp.eq.s32.totalorder %s23, 1
      %p46 = por %p44, %p45
      %p48 = scmp.ne.s32.totalorder %s31, %s47
      %p49 = scmp.eq.s32.totalorder %s23, 0
      %p50 = por %p48, %p49
      %s52 = sadd.s32 %s51, 1
      %p55 = scmp.eq.s32.totalorder %s17, 1
      %p56 = scmp.ne.s32.totalorder %s51, %s53
      %p57 = scmp.eq.s32.totalorder %s17, 0
      %p58 = por %p56, %p57
      %p59 = scmp.ne.s32.totalorder %s51, %s53
      %p60 = scmp.eq.s32.totalorder %s22, 1
      %p61 = por %p59, %p60
      %p62 = scmp.ne.s32.totalorder %s53, %s54
      %p63 = scmp.eq.s32.totalorder %s22, 0
      %p64 = por %p62, %p63
      %p65 = scmp.ne.s32.totalorder %s53, %s54
      %p66 = scmp.eq.s32.totalorder %s23, 1
      %p67 = por %p65, %p66
      %p69 = scmp.ne.s32.totalorder %s54, %s68
      %p70 = scmp.eq.s32.totalorder %s23, 0
      %p71 = por %p69, %p70
      %s73 = sadd.s32 %s72, 1
      %p76 = scmp.eq.s32.totalorder %s17, 1
      %p77 = scmp.ne.s32.totalorder %s72, %s74
      %p78 = scmp.eq.s32.totalorder %s17, 0
      %p79 = por %p77, %p78
      %p80 = scmp.ne.s32.totalorder %s72, %s74
      %p81 = scmp.eq.s32.totalorder %s22, 1
      %p82 = por %p80, %p81
      %p83 = scmp.ne.s32.totalorder %s74, %s75
      %p84 = scmp.eq.s32.totalorder %s22, 0
      %p85 = por %p83, %p84
      %p86 = scmp.ne.s32.totalorder %s74, %s75
      %p87 = scmp.eq.s32.totalorder %s23, 1
      %p88 = por %p86, %p87
      %p90 = scmp.ne.s32.totalorder %s75, %s89
      %p91 = scmp.eq.s32.totalorder %s23, 0
      %p92 = por %p90, %p91
      %s94 = sadd.s32 %s93, 1
      %p97 = scmp.eq.s32.totalorder %s17, 1
      %p98 = scmp.ne.s32.totalorder %s93, %s95
      %p99 = scmp.eq.s32.totalorder %s17, 0
      %p100 = por %p98, %p99
      %p101 = scmp.ne.s32.totalorder %s93, %s95
      %p102 = scmp.eq.s32.totalorder %s22, 1
      %p103 = por %p101, %p102
      %p104 = scmp.ne.s32.totalorder %s95, %s96
      %p105 = scmp.eq.s32.totalorder %s22, 0
      %p106 = por %p104, %p105
      %p107 = scmp.ne.s32.totalorder %s95, %s96
      %p108 = scmp.eq.s32.totalorder %s23, 1
      %p109 = por %p107, %p108
      %p111 = scmp.ne.s32.totalorder %s96, %s110
      %p112 = scmp.eq.s32.totalorder %s23, 0
      %p113 = por %p111, %p112
      %s114 = ssub.s32 %s17, %s24
      %p115 = scmp.eq.s32.totalorder %s114, 0
      %s117 = sadd.s32 %s116, 1
      %s118 = scalar_select %p115, %s116, %s117
      %p121 = pneg %p115
      %p122 = scmp.eq.s32.totalorder %s17, 1
      %p123 = por %p121, %p122
      %p124 = scmp.ne.s32.totalorder %s116, %s119
      %p125 = scmp.eq.s32.totalorder %s17, 0
      %p126 = por %p124, %p125
      %p127 = scmp.ne.s32.totalorder %s116, %s119
      %p128 = scmp.eq.s32.totalorder %s22, 1
      %p129 = por %p127, %p128
      %p130 = scmp.ne.s32.totalorder %s119, %s120
      %p131 = scmp.eq.s32.totalorder %s22, 0
      %p132 = por %p130, %p131
      %p133 = scmp.ne.s32.totalorder %s119, %s120
      %p134 = scmp.eq.s32.totalorder %s23, 1
      %p135 = por %p133, %p134
      %p137 = scmp.ne.s32.totalorder %s120, %s136
      %p138 = scmp.eq.s32.totalorder %s23, 0
      %p139 = por %p137, %p138
      %p140 = scmp.le.s32.totalorder 1, %s17
      %p141 = scmp.lt.s32.totalorder %s17, 3
      %p142 = pnand %p140, %p141
      %p143 = pneg %p142
      // Predicated region
      $region9: #{tpu_custom_call.1} parent=5 // pred_check
        _
      $region10: #{tpu_custom_call.1} parent=5 // pred_check_branch
        %145 = sbr.rel (%p142) target = $region12
      $region11: #{tpu_custom_call.1} parent=5 // pred_region
        %s146 = ssub.s32 %s17, 1
        // Predicated region
        $region13: #{tpu_custom_call.1} parent=11 // pred_check
          %p147 = pneg %p64
        $region14: #{tpu_custom_call.1} parent=11 // pred_check_branch
          %149 = sbr.rel (%p147) target = $region16
        $region15: #{tpu_custom_call.1} parent=11 // pred_region
          _
        $region16: #{tpu_custom_call.1} parent=11 // pred_fallthru
          _
        // Predicated region
        $region17: #{tpu_custom_call.1} parent=11 // pred_check
          %p150 = pneg %p85
        $region18: #{tpu_custom_call.1} parent=11 // pred_check_branch
          %152 = sbr.rel (%p150) target = $region20
        $region19: #{tpu_custom_call.1} parent=11 // pred_region
          _
        $region20: #{tpu_custom_call.1} parent=11 // pred_fallthru
          _
        // Predicated region
        $region21: #{tpu_custom_call.1} parent=11 // pred_check
          %p153 = pneg %p106
        $region22: #{tpu_custom_call.1} parent=11 // pred_check_branch
          %155 = sbr.rel (%p153) target = $region24
        $region23: #{tpu_custom_call.1} parent=11 // pred_region
          %s157 = ssub.s32 512, 512
          %158 = vsyncadd [#allocation6], %s157
          %s159 = sshll.u32 [#allocation5], 4
          %s160 = int_to_ptr.vmem [resolvable:$true] %s159
          %165 = dma.hbm_to_vmem [thread:$0]  %s3, 512, %s160, [#allocation6], 128, 128, 8
        $region24: #{tpu_custom_call.1} parent=11 // pred_fallthru
          _
      $region12: #{tpu_custom_call.1} parent=5 // pred_fallthru
        _
      %p166 = scmp.lt.s32.totalorder %s17, 2
      // Predicated region
      $region25: #{tpu_custom_call.1} parent=5 // pred_check
        %p167 = pneg %p166
      $region26: #{tpu_custom_call.1} parent=5 // pred_check_branch
        %169 = sbr.rel (%p167) target = $region28
      $region27: #{tpu_custom_call.1} parent=5 // pred_region
        // Predicated region
        $region29: #{tpu_custom_call.1} parent=27 // pred_check
          %p170 = pneg %p37
        $region30: #{tpu_custom_call.1} parent=27 // pred_check_branch
          %172 = sbr.rel (%p170) target = $region32
        $region31: #{tpu_custom_call.1} parent=27 // pred_region
          %s173 = sand.u32 %s27, 1
          %s174 = scalar_lea.sflag [#allocation3], %s173
          %s175 = sand.u32 %s27, 1
          %s176 = smul.addr %s175, 64
          %s177 = scalar_lea.vmem [#allocation2], %s176
          %s179 = ssub.s32 1024, 1024
          %180 = vsyncadd %s174, %s179
          %s181 = smul.addr %s17, 8
          %s182 = smul.addr %s181, 128
          %s183 = scalar_lea.hbm %s0, %s182
          %s184 = sshll.u32 %s177, 4
          %s185 = int_to_ptr.vmem [resolvable:$true] %s184
          %190 = dma.hbm_to_vmem [thread:$0]  %s183, 1024, %s185, %s174, 256, 256, 16
        $region32: #{tpu_custom_call.1} parent=27 // pred_fallthru
          _
      $region28: #{tpu_custom_call.1} parent=5 // pred_fallthru
        _
      %p191 = scmp.le.s32.totalorder 1, %s17
      %p192 = scmp.lt.s32.totalorder %s17, 3
      %p193 = pnand %p191, %p192
      %p194 = pneg %p193
      // Predicated region
      $region33: #{tpu_custom_call.1} parent=5 // pred_check
        _
      $region34: #{tpu_custom_call.1} parent=5 // pred_check_branch
        %196 = sbr.rel (%p193) target = $region36
      $region35: #{tpu_custom_call.1} parent=5 // pred_region
        %s197 = ssub.s32 %s17, 1
        %s198 = sand.u32 %s30, 1
        %s199 = scalar_lea.sflag [#allocation3], %s198
        %s200 = sand.u32 %s30, 1
        %s201 = smul.addr %s200, 64
        %s202 = scalar_lea.vmem [#allocation2], %s201
        // Predicated region
        $region37: #{tpu_custom_call.1} parent=35 // pred_check
          %p203 = pneg %p43
        $region38: #{tpu_custom_call.1} parent=35 // pred_check_branch
          %205 = sbr.rel (%p203) target = $region40
        $region39: #{tpu_custom_call.1} parent=35 // pred_region
          %206 = dma.done %s199, 1024
        $region40: #{tpu_custom_call.1} parent=35 // pred_fallthru
          _
        // Predicated region
        $region41: #{tpu_custom_call.1} parent=35 // pred_check
          %p207 = pneg %p106
        $region42: #{tpu_custom_call.1} parent=35 // pred_check_branch
          %209 = sbr.rel (%p207) target = $region44
        $region43: #{tpu_custom_call.1} parent=35 // pred_region
          %210 = dma.done [#allocation6], 512
        $region44: #{tpu_custom_call.1} parent=35 // pred_fallthru
          _
        %s211 = sand.u32 %s30, 1
        %s212 = scalar_lea.sflag [#allocation3], %s211
        %s213 = sand.u32 %s30, 1
        %s214 = smul.addr %s213, 64
        %s215 = scalar_lea.vmem [#allocation2], %s214
        %p216 = pneg %p43
        %p217 = pneg %p40
        %p218 = pneg %p64
        %p219 = pneg %p61
        %p220 = pneg %p85
        %p221 = pneg %p82
        %p222 = pneg %p106
        %p223 = pneg %p103
        %p224 = pneg %p132
        %p225 = pneg %p129
        %s226 = sand.u32 %s119, 1
        %s227 = scalar_lea.sflag [#allocation4], %s226
        %s228 = sand.u32 %s119, 1
        %s229 = smul.addr %s228, 64
        %s230 = scalar_lea.vmem [#allocation7], %s229
        %v231 = vld [vmem:[%s202] sm:$0xff]
        %v232 = vld [vmem:[%s202 + $0x8] sm:$0xff]
        %v233 = vld [vmem:[%s202 + $0x10] sm:$0xff]
        %v234 = vld [vmem:[%s202 + $0x18] sm:$0xff]
        %v235 = vld [vmem:[%s202 + $0x20] sm:$0xff]
        %v236 = vld [vmem:[%s202 + $0x28] sm:$0xff]
        %v237 = vld [vmem:[%s202 + $0x30] sm:$0xff]
        %v238 = vld [vmem:[%s202 + $0x38] sm:$0xff]
        %v239 = vadd.f32 %v231, %v232
        %240 = vadd.xlane.f32.xlu0 %v239
        %v241 = vpop.xlane.xlu0 %240
        %v242 = vadd.f32 %v233, %v234
        %243 = vadd.xlane.f32.xlu0 %v242
        %v244 = vpop.xlane.xlu0 %243
        %v245 = vadd.f32 %v235, %v236
        %246 = vadd.xlane.f32.xlu0 %v245
        %v247 = vpop.xlane.xlu0 %246
        %v248 = vadd.f32 %v237, %v238
        %249 = vadd.xlane.f32.xlu0 %v248
        %v250 = vpop.xlane.xlu0 %249
        %v251 = vmul.f32 %v241, 0.00390625
        %v252 = vmul.f32 %v244, 0.00390625
        %v253 = vmul.f32 %v247, 0.00390625
        %v254 = vmul.f32 %v250, 0.00390625
        %v255 = vmax.f32 %v231, %v232
        %256 = vmax.xlane.f32.xlu0 %v255
        %v257 = vpop.xlane.xlu0 %256
        %v258 = vmax.f32 %v233, %v234
        %259 = vmax.xlane.f32.xlu0 %v258
        %v260 = vpop.xlane.xlu0 %259
        %v261 = vmax.f32 %v235, %v236
        %262 = vmax.xlane.f32.xlu0 %v261
        %v263 = vpop.xlane.xlu0 %262
        %v264 = vmax.f32 %v237, %v238
        %265 = vmax.xlane.f32.xlu0 %v264
        %v266 = vpop.xlane.xlu0 %265
        %v267 = vadd.f32 %v251, %v257
        %v268 = vadd.f32 %v252, %v260
        %v269 = vadd.f32 %v253, %v263
        %v270 = vadd.f32 %v254, %v266
        %v271 = vld [vmem:[%s1] sm:$0x1]
        %v273 = vlaneseq
        %v274 = vshrl.u32 %v273, 7
        %v275 = vsub.s32 0, %v274
        %v276 = vrot.slane %v271, %v275
        %278 = vbcast.lane.b32.xlu0 %v276, 256
        %v279 = vpop.permute.xlu0 %278
        %s281 = sor.u32 256, 8
        %282 = vbcast.lane.b32.xlu0 %v276, %s281
        %v283 = vpop.permute.xlu0 %282
        %s285 = sor.u32 256, 16
        %286 = vbcast.lane.b32.xlu0 %v276, %s285
        %v287 = vpop.permute.xlu0 %286
        %s289 = sor.u32 256, 24
        %290 = vbcast.lane.b32.xlu0 %v276, %s289
        %v291 = vpop.permute.xlu0 %290
        %v296 = vmul.f32 %v267, %v279
        %v297 = vmul.f32 %v268, %v283
        %v298 = vmul.f32 %v269, %v287
        %v299 = vmul.f32 %v270, %v291
        %v300 = vld [vmem:[%s2] sm:$0x1]
        %v302 = vlaneseq
        %v303 = vshrl.u32 %v302, 7
        %v304 = vsub.s32 0, %v303
        %v305 = vrot.slane %v300, %v304
        %307 = vbcast.lane.b32.xlu0 %v305, 256
        %v308 = vpop.permute.xlu0 %307
        %s310 = sor.u32 256, 8
        %311 = vbcast.lane.b32.xlu0 %v305, %s310
        %v312 = vpop.permute.xlu0 %311
        %s314 = sor.u32 256, 16
        %315 = vbcast.lane.b32.xlu0 %v305, %s314
        %v316 = vpop.permute.xlu0 %315
        %s318 = sor.u32 256, 24
        %319 = vbcast.lane.b32.xlu0 %v305, %s318
        %v320 = vpop.permute.xlu0 %319
        %v325 = vadd.f32 %v296, %v308
        %v326 = vadd.f32 %v297, %v312
        %v327 = vadd.f32 %v298, %v316
        %v328 = vadd.f32 %v299, %v320
        %v329 = vmax.f32 %v325, 0.0
        %v330 = vmax.f32 %v326, 0.0
        %v331 = vmax.f32 %v327, 0.0
        %v332 = vmax.f32 %v328, 0.0
        %v333 = vld [vmem:[#allocation5] sm:$0xff]
        %v334 = vld [vmem:[#allocation5 + $0x8] sm:$0xff]
        %v335 = vld [vmem:[#allocation5 + $0x10] sm:$0xff]
        %v336 = vld [vmem:[#allocation5 + $0x18] sm:$0xff]
        %341 = vset.pattern.permute.xlu0 0
        %342 = vperm.xlu0 %341, %v329
        %v343 = vpop.permute.xlu0 %342
        %344 = vset.pattern.permute.xlu0 0
        %345 = vperm.xlu0 %344, %v330
        %v346 = vpop.permute.xlu0 %345
        %347 = vset.pattern.permute.xlu0 0
        %348 = vperm.xlu0 %347, %v331
        %v349 = vpop.permute.xlu0 %348
        %350 = vset.pattern.permute.xlu0 0
        %351 = vperm.xlu0 %350, %v332
        %v352 = vpop.permute.xlu0 %351
        %v353 = vlaneseq
        %v354 = vand.u32 %v353, 127
        %v355 = vlaneseq
        %v356 = vshrl.u32 %v355, 7
        %v357 = vsub.s32 %v354, %v356
        %v358 = vrot.slane %v343, %v357
        %v359 = vadd.s32 %v354, 4294967288
        %v360 = vlaneseq
        %v361 = vshrl.u32 %v360, 7
        %v362 = vsub.s32 %v359, %v361
        %v363 = vrot.slane %v346, %v362
        %vm364 = vcmask 130112
        %v365 = vsel %vm364, %v363, %v358
        %v366 = vadd.s32 %v354, 4294967280
        %v367 = vlaneseq
        %v368 = vshrl.u32 %v367, 7
        %v369 = vsub.s32 %v366, %v368
        %v370 = vrot.slane %v349, %v369
        %vm371 = vcmask 195712
        %v372 = vsel %vm371, %v370, %v365
        %v373 = vadd.s32 %v354, 4294967272
        %v374 = vlaneseq
        %v375 = vshrl.u32 %v374, 7
        %v376 = vsub.s32 %v373, %v375
        %v377 = vrot.slane %v352, %v376
        %vm378 = vcmask 261312
        %v379 = vsel %vm378, %v377, %v372
        %vm380 = vcmask 261120
        %v381 = vsel %vm380, %v379, 0
        %383 = vmatprep.subr.mxu0 0.0
        %384 = vmatpush1.msra.mxu0 %v333
        %385 = vmatprep.subr.mxu0 0.0
        %386 = vmatpush1.msra.mxu0 %v334
        %387 = vmatprep.subr.mxu0 0.0
        %388 = vmatpush1.msra.mxu0 %v335
        %389 = vmatprep.subr.mxu0 0.0
        %390 = vmatpush1.msra.mxu0 %v336
        %391 = vmatprep.subr.mxu0 0.0
        %392 = vmatpush1.msra.mxu0 0.0
        %393 = vmatprep.subr.mxu0 0.0
        %394 = vmatpush1.msra.mxu0 0.0
        %395 = vmatprep.subr.mxu0 0.0
        %396 = vmatpush1.msra.mxu0 0.0
        %397 = vmatprep.subr.mxu0 0.0
        %398 = vmatpush1.msra.mxu0 0.0
        %399 = vmatprep.subr.mxu0 0.0
        %400 = vmatpush1.msra.mxu0 0.0
        %401 = vmatprep.subr.mxu0 0.0
        %402 = vmatpush1.msra.mxu0 0.0
        %403 = vmatprep.subr.mxu0 0.0
        %404 = vmatpush1.msra.mxu0 0.0
        %405 = vmatprep.subr.mxu0 0.0
        %406 = vmatpush1.msra.mxu0 0.0
        %407 = vmatprep.subr.mxu0 0.0
        %408 = vmatpush1.msra.mxu0 0.0
        %409 = vmatprep.subr.mxu0 0.0
        %410 = vmatpush1.msra.mxu0 0.0
        %411 = vmatprep.subr.mxu0 0.0
        %412 = vmatpush1.msra.mxu0 0.0
        %413 = vmatprep.subr.mxu0 0.0
        %414 = vmatpush1.msra.mxu0 0.0
        %415 = vmatprep.subr.mxu0 0.0
        %416 = vmatpush1.msra.mxu0 0.0
        %417 = vmatprep.subr.mxu0 0.0
        %418 = vmatpush1.msra.mxu0 0.0
        %419 = vmatprep.subr.mxu0 0.0
        %420 = vmatpush1.msra.mxu0 0.0
        %421 = vmatprep.subr.mxu0 0.0
        %422 = vmatpush1.msra.mxu0 0.0
        %423 = vmatprep.subr.mxu0 0.0
        %424 = vmatpush1.msra.mxu0 0.0
        %425 = vmatprep.subr.mxu0 0.0
        %426 = vmatpush1.msra.mxu0 0.0
        %427 = vmatprep.subr.mxu0 0.0
        %428 = vmatpush1.msra.mxu0 0.0
        %429 = vmatprep.subr.mxu0 0.0
        %430 = vmatpush1.msra.mxu0 0.0
        %431 = vmatprep.subr.mxu0 0.0
        %432 = vmatpush1.msra.mxu0 0.0
        %433 = vmatprep.subr.mxu0 0.0
        %434 = vmatpush1.msra.mxu0 0.0
        %435 = vmatprep.subr.mxu0 0.0
        %436 = vmatpush1.msra.mxu0 0.0
        %437 = vmatprep.subr.mxu0 0.0
        %438 = vmatpush1.msra.mxu0 0.0
        %439 = vmatprep.subr.mxu0 0.0
        %440 = vmatpush1.msra.mxu0 0.0
        %441 = vmatprep.subr.mxu0 0.0
        %442 = vmatpush1.msra.mxu0 0.0
        %443 = vmatprep.subr.mxu0 0.0
        %444 = vmatpush1.msra.mxu0 0.0
        %445 = vmatprep.subr.mxu0 0.0
        %446 = vmatpush1.msra.mxu0 0.0
        %447 = vmatprep.mubr.f32.mxu0 0.0
        %448 = vmatmul.mubr.f32.gmra.mrb[0].mxu0 %v381
        %v449 = vpop.f32.mrb[0].mxu0
        %v450 = vadd.f32 0.0, %v449
        %v451 = vpop.f32.mrb[0].mxu0
        %452 = vdwg.mxu0
        %v453 = vxor.u32 %v450, 2147483648
        %v454 = vmul.f32 %v453, 1.442695
        %v455 = vpow.pop %v454
        %v456 = vadd.f32 %v455, 1.0
        %v457 = vrcp.pop %v456
        %v458 = vmul.f32 1.0, %v457
        %v459 = vlaneseq
        %v460 = vshrl.u32 %v459, 7
        %v461 = vsub.s32 0, %v460
        %v462 = vrot.slane %v458, %v461
        %464 = vbcast.lane.b32.xlu0 %v462, 256
        %v465 = vpop.permute.xlu0 %464
        %s467 = sor.u32 256, 8
        %468 = vbcast.lane.b32.xlu0 %v462, %s467
        %v469 = vpop.permute.xlu0 %468
        %s471 = sor.u32 256, 16
        %472 = vbcast.lane.b32.xlu0 %v462, %s471
        %v473 = vpop.permute.xlu0 %472
        %s475 = sor.u32 256, 24
        %476 = vbcast.lane.b32.xlu0 %v462, %s475
        %v477 = vpop.permute.xlu0 %476
        %v478 = vmul.f32 %v231, %v465
        %v479 = vmul.f32 %v232, %v465
        %v480 = vmul.f32 %v233, %v469
        %v481 = vmul.f32 %v234, %v469
        %v482 = vmul.f32 %v235, %v473
        %v483 = vmul.f32 %v236, %v473
        %v484 = vmul.f32 %v237, %v477
        %v485 = vmul.f32 %v238, %v477
        %486 = vst [vmem:[%s230] sm:$0xff] %v478
        %487 = vst [vmem:[%s230 + $0x8] sm:$0xff] %v479
        %488 = vst [vmem:[%s230 + $0x10] sm:$0xff] %v480
        %489 = vst [vmem:[%s230 + $0x18] sm:$0xff] %v481
        %490 = vst [vmem:[%s230 + $0x20] sm:$0xff] %v482
        %491 = vst [vmem:[%s230 + $0x28] sm:$0xff] %v483
        %492 = vst [vmem:[%s230 + $0x30] sm:$0xff] %v484
        %493 = vst [vmem:[%s230 + $0x38] sm:$0xff] %v485
        %s494 = sand.u32 %s119, 1
        %s495 = scalar_lea.sflag [#allocation4], %s494
        %s496 = sand.u32 %s119, 1
        %s497 = smul.addr %s496, 64
        %s498 = scalar_lea.vmem [#allocation7], %s497
        // Predicated region
        $region45: #{tpu_custom_call.1} parent=35 // pred_check
          %p499 = pneg %p129
        $region46: #{tpu_custom_call.1} parent=35 // pred_check_branch
          %501 = sbr.rel (%p499) target = $region48
        $region47: #{tpu_custom_call.1} parent=35 // pred_region
          %s503 = ssub.s32 1024, 1024
          %504 = vsyncadd %s495, %s503
          %s505 = smul.addr %s22, 8
          %s506 = smul.addr %s505, 128
          %s507 = scalar_lea.hbm %s4, %s506
          %s508 = sshll.u32 %s498, 4
          %s509 = int_to_ptr.vmem [resolvable:$true] %s508
          %514 = dma.vmem_to_hbm [thread:$0]  %s509, 1024, %s507, %s495, 256, 256, 16
        $region48: #{tpu_custom_call.1} parent=35 // pred_fallthru
          _
      $region36: #{tpu_custom_call.1} parent=5 // pred_fallthru
        _
      %p515 = scmp.le.s32.totalorder 2, %s17
      // Predicated region
      $region49: #{tpu_custom_call.1} parent=5 // pred_check
        %p516 = pneg %p515
      $region50: #{tpu_custom_call.1} parent=5 // pred_check_branch
        %518 = sbr.rel (%p516) target = $region52
      $region51: #{tpu_custom_call.1} parent=5 // pred_region
        %s519 = ssub.s32 %s17, 2
        // Predicated region
        $region53: #{tpu_custom_call.1} parent=51 // pred_check
          %p520 = pneg %p135
        $region54: #{tpu_custom_call.1} parent=51 // pred_check_branch
          %522 = sbr.rel (%p520) target = $region56
        $region55: #{tpu_custom_call.1} parent=51 // pred_region
          %s523 = sand.u32 %s120, 1
          %s524 = scalar_lea.sflag [#allocation4], %s523
          %s525 = sand.u32 %s120, 1
          %s526 = smul.addr %s525, 64
          %s527 = scalar_lea.vmem [#allocation7], %s526
          %528 = dma.done %s524, 1024
        $region56: #{tpu_custom_call.1} parent=51 // pred_fallthru
          _
      $region52: #{tpu_custom_call.1} parent=5 // pred_fallthru
        _
    $region6: #{tpu_custom_call.1} parent=1 // loop_footer
      %s21 = sadd.s32 1, %s17
    $region7: #{tpu_custom_call.1} parent=1 // loop_footer_branch
      %16 = sbr.rel target = $region3
    $region8: #{tpu_custom_call.1} parent=1 // loop_exit
      _
    %529 = vsyncpa [#allocation3], 1
    %s530 = scalar_lea.sflag [#allocation3], 1
    %531 = vsyncpa %s530, 1
    %532 = vsyncpa [#allocation6], 1
    %533 = vsyncpa [#allocation4], 1
    %s534 = scalar_lea.sflag [#allocation4], 1
    %535 = vsyncpa %s534, 1

</llo_original>
